<compile_context>
chip_gen: v7x
topology: tpu7x:2x2x1
jax: 0.10.0
libtpu: 0.0.40
codegen_flags: <defaults>
</compile_context>

<pallas_src>
import jax
import jax.numpy as jnp
from jax.experimental import pallas as pl
from jax.experimental.pallas import tpu as pltpu

HIDDEN = 256  # matches nn.Linear(..., 256) in the PyTorch module


def _round_up(x, m):
    return (x + m - 1) // m * m


def _critic_kernel(x_ref, w1_ref, b14_ref, wh_ref, w5_ref, b5_ref, out_ref):
    """One (TB, Kp) batch tile of the fused critic forward pass.

    x_ref  : (TB, Kp) zero-padded [state; action] tile, compute dtype.
    w1_ref : (Kp, 256) merged layer-1 weight (compute dtype).
    b14_ref: (4, 256) f32 biases of layers 1-4.
    wh_ref : (3, 256, 256) stacked layer 2-4 weights (compute dtype).
    w5_ref : (1, 256) f32 final-layer weight row.
    b5_ref : (1, 1) f32 final-layer bias.
    out_ref: (TB, 1) Q-values.
    """
    cdt = w1_ref.dtype                       # MXU dtype (bf16 by default)
    b14 = b14_ref[...]                       # (4, 256) f32

    # Layer 1: merged [s;a] @ W1 — a single MXU pass with f32 accumulation.
    h = jnp.dot(x_ref[...], w1_ref[...], preferred_element_type=jnp.float32)
    h = jnp.maximum(h + b14[0], 0.0)

    # Layers 2-4: (TB,256)@(256,256) on the MXU; bias + ReLU in f32 on the VPU.
    for l in range(3):
        h = jnp.dot(h.astype(cdt), wh_ref[l],
                    preferred_element_type=jnp.float32)
        h = jnp.maximum(h + b14[l + 1], 0.0)

    # Layer 5 (256 -> 1): VPU multiply, fold the two 128-lane halves with a
    # VPU add, then one 128-lane XLU reduction (no 1-wide MXU matmul).
    hw = h * w5_ref[...]                                  # (TB, 256) f32
    hw = hw[:, :HIDDEN // 2] + hw[:, HIDDEN // 2:]        # (TB, 128) VPU add
    q = jnp.sum(hw, axis=-1, keepdims=True) + b5_ref[...]
    out_ref[...] = q.astype(out_ref.dtype)


def init_critic_params(key, state_dim, action_dim, dtype=jnp.float32):
    """PyTorch-style U(-1/sqrt(fan_in), 1/sqrt(fan_in)) init.

    Weights are stored transposed: (in_features, out_features)."""
    dims = [state_dim + action_dim, HIDDEN, HIDDEN, HIDDEN, HIDDEN, 1]
    params = []
    for i in range(5):
        fan_in, fan_out = dims[i], dims[i + 1]
        key, kw, kb = jax.random.split(key, 3)
        bound = float(fan_in) ** -0.5
        w = jax.random.uniform(kw, (fan_in, fan_out), dtype, -bound, bound)
        b = jax.random.uniform(kb, (1, fan_out), dtype, -bound, bound)
        params.append((w, b))
    return params


def prepare_critic_params(params, state_dim, action_dim,
                          weight_dtype=jnp.bfloat16):
    """Repack reference params for the kernel:
      * merge W1 into a single (Kp, 256) weight, contraction zero-padded to a
        multiple of 16 (bf16 sublane packing; also fine for f32),
      * stack W2..W4 into (3, 256, 256) and b1..b4 into (4, 256) f32,
      * keep W5 as a (1, 256) f32 row and b5 as (1, 1) f32,
      * store matmul weights in `weight_dtype` (bf16 default, f32 accumulation).
    """
    (w1, b1), (w2, b2), (w3, b3), (w4, b4), (w5, b5) = params
    K = state_dim + action_dim
    Kp = _round_up(K, 16)

    w1p = (jnp.zeros((Kp, HIDDEN), weight_dtype)
           .at[:K].set(w1.astype(weight_dtype)))
    wh = jnp.stack([w2, w3, w4]).astype(weight_dtype)            # (3,256,256)
    b14 = jnp.stack([b1.reshape(-1), b2.reshape(-1),
                     b3.reshape(-1), b4.reshape(-1)]).astype(jnp.float32)
    w5_row = w5.reshape(1, HIDDEN).astype(jnp.float32)
    b5_sq = b5.reshape(1, 1).astype(jnp.float32)
    return (w1p, b14, wh, w5_row, b5_sq)


def critic_forward(state, action, prepared_params, *, block_batch=4096):
    """state: (B, state_dim), action: (B, action_dim) -> Q: (B, 1)."""
    w1p, b14, wh, w5_row, b5_sq = prepared_params
    cdt = w1p.dtype                       # compute / MXU dtype
    B, state_dim = state.shape
    action_dim = action.shape[1]
    K = state_dim + action_dim
    Kp = w1p.shape[0]

    # --- batch tiling --------------------------------------------------------
    Bp8 = _round_up(max(B, 1), 8)
    bb = max(_round_up(block_batch, 8), 8)
    nsteps = max(pl.cdiv(Bp8, bb), 1)
    if nsteps == 1 and Bp8 >= 512:
        nsteps = 2                        # >=2 grid steps -> megacore on v7x
    TB = _round_up(pl.cdiv(Bp8, nsteps), 8)   # always a multiple of 8
    grid_n = pl.cdiv(Bp8, TB)
    Bp = grid_n * TB                      # pads by < 8*nsteps rows only

    # Single fused wrapper pass: concat + zero-pad + cast to the MXU dtype.
    x = jnp.zeros((Bp, Kp), cdt)
    x = x.at[:B, :state_dim].set(state.astype(cdt))
    x = x.at[:B, state_dim:K].set(action.astype(cdt))

    def resident(arr):  # whole array, same block every step -> stays in VMEM
        return pl.BlockSpec(arr.shape, lambda *i: (0,) * arr.ndim)

    out = pl.pallas_call(
        _critic_kernel,
        out_shape=jax.ShapeDtypeStruct((Bp, 1), jnp.float32),
        grid=(grid_n,),
        in_specs=[pl.BlockSpec((TB, Kp), lambda i: (i, 0)),
                  resident(w1p), resident(b14), resident(wh),
                  resident(w5_row), resident(b5_sq)],
        out_specs=pl.BlockSpec((TB, 1), lambda i: (i, 0)),
        compiler_params=pltpu.CompilerParams(
            dimension_semantics=("parallel",),   # shard batch tiles across TCs
            vmem_limit_bytes=48 * 1024 * 1024),  # safe on v5e/v6e/v7x
    )(x, w1p, b14, wh, w5_row, b5_sq)
    return out[:B].astype(state.dtype)


def critic_forward_ref(state, action, params):
    """Pure-JAX reference (matches the PyTorch module)."""
    x = jnp.concatenate([state, action], axis=1)
    for i, (w, b) in enumerate(params):
        x = x @ w + b
        if i < 4:
            x = jnp.maximum(x, 0.0)
    return x


if __name__ == "__main__":
    key = jax.random.PRNGKey(0)
    batch, state_dim, action_dim = 2, 16, 4

    k_params, k_state, k_action = jax.random.split(key, 3)
    params = init_critic_params(k_params, state_dim, action_dim)

    state = jax.random.normal(k_state, (batch, state_dim), jnp.float32)
    action = jax.random.normal(k_action, (batch, action_dim), jnp.float32)
    q_ref = critic_forward_ref(state, action, params)

    # f32 weights: must match the fp32 reference tightly.
    p_f32 = prepare_critic_params(params, state_dim, action_dim, jnp.float32)
    q = critic_forward(state, action, p_f32)
    jax.block_until_ready(q)
    assert q.shape == (batch, 1)
    assert jnp.allclose(q, q_ref, atol=1e-4, rtol=1e-4), (q, q_ref)

    # bf16 weights + bf16 activations (default), f32 accumulation: looser tol.
    p_bf16 = prepare_critic_params(params, state_dim, action_dim)
    q_bf16 = critic_forward(state, action, p_bf16)
    jax.block_until_ready(q_bf16)
    assert jnp.allclose(q_bf16, q_ref, atol=1e-1, rtol=1e-1), (q_bf16, q_ref)

    # Non-divisible batch + small tile exercises the multi-step grid path.
    kb_s, kb_a = jax.random.split(jax.random.PRNGKey(1))
    state_b = jax.random.normal(kb_s, (200, state_dim), jnp.float32)
    action_b = jax.random.normal(kb_a, (200, action_dim), jnp.float32)
    q_b = critic_forward(state_b, action_b, p_f32, block_batch=64)
    jax.block_until_ready(q_b)
    q_b_ref = critic_forward_ref(state_b, action_b, params)
    assert q_b.shape == (200, 1)
    assert jnp.allclose(q_b, q_b_ref, atol=1e-4, rtol=1e-4)

    # Forced 2-step split path (B >= 512 in one tile -> split for megacore).
    kc_s, kc_a = jax.random.split(jax.random.PRNGKey(2))
    state_c = jax.random.normal(kc_s, (600, state_dim), jnp.float32)
    action_c = jax.random.normal(kc_a, (600, action_dim), jnp.float32)
    q_c = critic_forward(state_c, action_c, p_bf16)
    jax.block_until_ready(q_c)
    q_c_ref = critic_forward_ref(state_c, action_c, params)
    assert q_c.shape == (600, 1)
    assert jnp.allclose(q_c, q_c_ref, atol=1e-1, rtol=1e-1)

    print("KERNEL_OK")
</pallas_src>

<mosaic_0001>
module attributes {stable_mosaic.version = 11 : i64} {
  func.func @_critic_kernel(%arg0: i32, %arg1: memref<8x32xf32, #tpu.memory_space<vmem>>, %arg2: memref<32x256xf32, #tpu.memory_space<vmem>>, %arg3: memref<4x256xf32, #tpu.memory_space<vmem>>, %arg4: memref<3x256x256xf32, #tpu.memory_space<vmem>>, %arg5: memref<1x256xf32, #tpu.memory_space<vmem>>, %arg6: memref<1x1xf32, #tpu.memory_space<vmem>>, %arg7: memref<8x1xf32, #tpu.memory_space<vmem>>) attributes {dimension_semantics = [#tpu.dimension_semantics<parallel>], iteration_bounds = array<i64: 1>, scalar_prefetch = 0 : i64, scratch_operands = 0 : i64, tpu.core_type = #tpu.core_type<tc>, window_params = [{transform_indices = @transform_0, window_bounds = array<i64: 8, 32>}, {pipeline_mode = #tpu.pipeline_mode<synchronous>, transform_indices = @transform_1, window_bounds = array<i64: 32, 256>}, {pipeline_mode = #tpu.pipeline_mode<synchronous>, transform_indices = @transform_2, window_bounds = array<i64: 4, 256>}, {pipeline_mode = #tpu.pipeline_mode<synchronous>, transform_indices = @transform_3, window_bounds = array<i64: 3, 256, 256>}, {pipeline_mode = #tpu.pipeline_mode<synchronous>, transform_indices = @transform_4, window_bounds = array<i64: 1, 256>}, {pipeline_mode = #tpu.pipeline_mode<synchronous>, transform_indices = @transform_5, window_bounds = array<i64: 1, 1>}, {transform_indices = @transform_6, window_bounds = array<i64: 8, 1>}]} {
    %c0 = arith.constant 0 : index
    %c0_0 = arith.constant 0 : index
    %0 = vector.load %arg3[%c0, %c0_0] : memref<4x256xf32, #tpu.memory_space<vmem>>, vector<4x256xf32>
    %c0_1 = arith.constant 0 : index
    %c0_2 = arith.constant 0 : index
    %1 = vector.load %arg1[%c0_1, %c0_2] : memref<8x32xf32, #tpu.memory_space<vmem>>, vector<8x32xf32>
    %c0_3 = arith.constant 0 : index
    %c0_4 = arith.constant 0 : index
    %2 = vector.load %arg2[%c0_3, %c0_4] : memref<32x256xf32, #tpu.memory_space<vmem>>, vector<32x256xf32>
    %cst = arith.constant dense<0.000000e+00> : vector<8x256xf32>
    %3 = tpu.matmul %1, %2, %cst {dimension_numbers = #tpu.dot_dimension_numbers<[1], [0], [0], [1], [0, 0, 1, 1], [], []>} : vector<8x32xf32>, vector<32x256xf32>, vector<8x256xf32> -> vector<8x256xf32>
    %4 = vector.extract_strided_slice %0 {offsets = [0, 0], sizes = [1, 256], strides = [1, 1]} : vector<4x256xf32> to vector<1x256xf32>
    %5 = vector.shape_cast %4 : vector<1x256xf32> to vector<256xf32>
    %6 = vector.shape_cast %5 : vector<256xf32> to vector<1x256xf32>
    %7 = vector.broadcast %6 : vector<1x256xf32> to vector<8x256xf32>
    %8 = arith.addf %3, %7 : vector<8x256xf32>
    %cst_5 = arith.constant 0.000000e+00 : f32
    %9 = vector.broadcast %cst_5 : f32 to vector<8x256xf32>
    %10 = arith.maximumf %8, %9 : vector<8x256xf32>
    %c0_6 = arith.constant 0 : index
    %c0_7 = arith.constant 0 : index
    %c0_8 = arith.constant 0 : index
    %11 = vector.load %arg4[%c0_6, %c0_7, %c0_8] : memref<3x256x256xf32, #tpu.memory_space<vmem>>, vector<1x256x256xf32>
    %12 = vector.shape_cast %11 : vector<1x256x256xf32> to vector<256x256xf32>
    %cst_9 = arith.constant dense<0.000000e+00> : vector<8x256xf32>
    %13 = tpu.matmul %10, %12, %cst_9 {dimension_numbers = #tpu.dot_dimension_numbers<[1], [0], [0], [1], [0, 0, 1, 1], [], []>} : vector<8x256xf32>, vector<256x256xf32>, vector<8x256xf32> -> vector<8x256xf32>
    %14 = vector.extract_strided_slice %0 {offsets = [1, 0], sizes = [1, 256], strides = [1, 1]} : vector<4x256xf32> to vector<1x256xf32>
    %15 = vector.shape_cast %14 : vector<1x256xf32> to vector<256xf32>
    %16 = vector.shape_cast %15 : vector<256xf32> to vector<1x256xf32>
    %17 = vector.broadcast %16 : vector<1x256xf32> to vector<8x256xf32>
    %18 = arith.addf %13, %17 : vector<8x256xf32>
    %cst_10 = arith.constant 0.000000e+00 : f32
    %19 = vector.broadcast %cst_10 : f32 to vector<8x256xf32>
    %20 = arith.maximumf %18, %19 : vector<8x256xf32>
    %c1 = arith.constant 1 : index
    %c0_11 = arith.constant 0 : index
    %c0_12 = arith.constant 0 : index
    %21 = vector.load %arg4[%c1, %c0_11, %c0_12] : memref<3x256x256xf32, #tpu.memory_space<vmem>>, vector<1x256x256xf32>
    %22 = vector.shape_cast %21 : vector<1x256x256xf32> to vector<256x256xf32>
    %cst_13 = arith.constant dense<0.000000e+00> : vector<8x256xf32>
    %23 = tpu.matmul %20, %22, %cst_13 {dimension_numbers = #tpu.dot_dimension_numbers<[1], [0], [0], [1], [0, 0, 1, 1], [], []>} : vector<8x256xf32>, vector<256x256xf32>, vector<8x256xf32> -> vector<8x256xf32>
    %24 = vector.extract_strided_slice %0 {offsets = [2, 0], sizes = [1, 256], strides = [1, 1]} : vector<4x256xf32> to vector<1x256xf32>
    %25 = vector.shape_cast %24 : vector<1x256xf32> to vector<256xf32>
    %26 = vector.shape_cast %25 : vector<256xf32> to vector<1x256xf32>
    %27 = vector.broadcast %26 : vector<1x256xf32> to vector<8x256xf32>
    %28 = arith.addf %23, %27 : vector<8x256xf32>
    %cst_14 = arith.constant 0.000000e+00 : f32
    %29 = vector.broadcast %cst_14 : f32 to vector<8x256xf32>
    %30 = arith.maximumf %28, %29 : vector<8x256xf32>
    %c2 = arith.constant 2 : index
    %c0_15 = arith.constant 0 : index
    %c0_16 = arith.constant 0 : index
    %31 = vector.load %arg4[%c2, %c0_15, %c0_16] : memref<3x256x256xf32, #tpu.memory_space<vmem>>, vector<1x256x256xf32>
    %32 = vector.shape_cast %31 : vector<1x256x256xf32> to vector<256x256xf32>
    %cst_17 = arith.constant dense<0.000000e+00> : vector<8x256xf32>
    %33 = tpu.matmul %30, %32, %cst_17 {dimension_numbers = #tpu.dot_dimension_numbers<[1], [0], [0], [1], [0, 0, 1, 1], [], []>} : vector<8x256xf32>, vector<256x256xf32>, vector<8x256xf32> -> vector<8x256xf32>
    %34 = vector.extract_strided_slice %0 {offsets = [3, 0], sizes = [1, 256], strides = [1, 1]} : vector<4x256xf32> to vector<1x256xf32>
    %35 = vector.shape_cast %34 : vector<1x256xf32> to vector<256xf32>
    %36 = vector.shape_cast %35 : vector<256xf32> to vector<1x256xf32>
    %37 = vector.broadcast %36 : vector<1x256xf32> to vector<8x256xf32>
    %38 = arith.addf %33, %37 : vector<8x256xf32>
    %cst_18 = arith.constant 0.000000e+00 : f32
    %39 = vector.broadcast %cst_18 : f32 to vector<8x256xf32>
    %40 = arith.maximumf %38, %39 : vector<8x256xf32>
    %c0_19 = arith.constant 0 : index
    %c0_20 = arith.constant 0 : index
    %41 = vector.load %arg5[%c0_19, %c0_20] : memref<1x256xf32, #tpu.memory_space<vmem>>, vector<1x256xf32>
    %42 = vector.broadcast %41 : vector<1x256xf32> to vector<8x256xf32>
    %43 = arith.mulf %40, %42 : vector<8x256xf32>
    %44 = vector.extract_strided_slice %43 {offsets = [0, 0], sizes = [8, 128], strides = [1, 1]} : vector<8x256xf32> to vector<8x128xf32>
    %45 = vector.extract_strided_slice %43 {offsets = [0, 128], sizes = [8, 128], strides = [1, 1]} : vector<8x256xf32> to vector<8x128xf32>
    %46 = arith.addf %44, %45 : vector<8x128xf32>
    %cst_21 = arith.constant dense<0.000000e+00> : vector<8xf32>
    %47 = vector.multi_reduction <add>, %46, %cst_21 [1] : vector<8x128xf32> to vector<8xf32>
    %48 = vector.shape_cast %47 : vector<8xf32> to vector<8x1xf32>
    %c0_22 = arith.constant 0 : index
    %c0_23 = arith.constant 0 : index
    %49 = vector.load %arg6[%c0_22, %c0_23] : memref<1x1xf32, #tpu.memory_space<vmem>>, vector<1x1xf32>
    %50 = vector.broadcast %49 : vector<1x1xf32> to vector<8x1xf32>
    %51 = arith.addf %48, %50 : vector<8x1xf32>
    %c0_24 = arith.constant 0 : index
    %c0_25 = arith.constant 0 : index
    %52 = vector.load %arg7[%c0_24, %c0_25] : memref<8x1xf32, #tpu.memory_space<vmem>>, vector<8x1xf32>
    tpu.vector_store %arg7[%c0_24, %c0_25], %51 {strides = array<i32>} : memref<8x1xf32, #tpu.memory_space<vmem>>, vector<8x1xf32>,
    return
  }
  func.func @transform_0(%arg0: i32) -> (i32, i32) {
    %c0_i32 = arith.constant 0 : i32
    %c0_i32_0 = arith.constant 0 : i32
    return %arg0, %c0_i32 : i32, i32
  }
  func.func @transform_1(%arg0: i32) -> (i32, i32) {
    %c0_i32 = arith.constant 0 : i32
    %c0_i32_0 = arith.constant 0 : i32
    %c0_i32_1 = arith.constant 0 : i32
    return %c0_i32, %c0_i32_0 : i32, i32
  }
  func.func @transform_2(%arg0: i32) -> (i32, i32) {
    %c0_i32 = arith.constant 0 : i32
    %c0_i32_0 = arith.constant 0 : i32
    %c0_i32_1 = arith.constant 0 : i32
    return %c0_i32, %c0_i32_0 : i32, i32
  }
  func.func @transform_3(%arg0: i32) -> (i32, i32, i32) {
    %c0_i32 = arith.constant 0 : i32
    %c0_i32_0 = arith.constant 0 : i32
    %c0_i32_1 = arith.constant 0 : i32
    %c0_i32_2 = arith.constant 0 : i32
    return %c0_i32, %c0_i32_0, %c0_i32_1 : i32, i32, i32
  }
  func.func @transform_4(%arg0: i32) -> (i32, i32) {
    %c0_i32 = arith.constant 0 : i32
    %c0_i32_0 = arith.constant 0 : i32
    %c0_i32_1 = arith.constant 0 : i32
    return %c0_i32, %c0_i32_0 : i32, i32
  }
  func.func @transform_5(%arg0: i32) -> (i32, i32) {
    %c0_i32 = arith.constant 0 : i32
    %c0_i32_0 = arith.constant 0 : i32
    %c0_i32_1 = arith.constant 0 : i32
    return %c0_i32, %c0_i32_0 : i32, i32
  }
  func.func @transform_6(%arg0: i32) -> (i32, i32) {
    %c0_i32 = arith.constant 0 : i32
    %c0_i32_0 = arith.constant 0 : i32
    return %arg0, %c0_i32 : i32, i32
  }
}

</mosaic_0001>

<llo_original>
// kernel: tpu_custom_call.1
$region0: #{tpu_custom_call.1}
  #allocation0 [shape = 'u32[]', space=smem, size = 0x4, offset = 0x4, fixed_abs, tag = 'smem constant byte address 0x4 - core index']
  #allocation1 [shape = 'u32[144,128]{1,0:T(1,128)}', space=vmem, size = 0x12000, scoped, tag = 'internal scratch']
  #allocation2 [shape = 'f32[1,1]{1,0:T(1,128)S(1)}', space=vmem, size = 0x200, scoped, tag = 'scoped memory for tpu_custom_call.1']
  %s0 = inlined_call_operand.hbm [shape: f32[8,32], index: 0, kind: input, shape index: {}]
  %s1 = inlined_call_operand.hbm [shape: f32[32,256], index: 1, kind: input, shape index: {}]
  %s2 = inlined_call_operand.vmem [shape: f32[4,256], index: 2, kind: input, shape index: {}]
  %s3 = inlined_call_operand.hbm [shape: f32[3,256,256], index: 3, kind: input, shape index: {}]
  %s4 = inlined_call_operand.vmem [shape: f32[1,256], index: 4, kind: input, shape index: {}]
  %s5 = inlined_call_operand.<no memory space> [shape: f32[1,1], index: 5, kind: input, shape index: {}]
  %s6 = inlined_call_operand.vmem [shape: f32[8,1], index: 6, kind: output, shape index: {}]
  %s7 = sld [smem:[#allocation0]]
  $region46: #{tpu_custom_call.1} parent=0
    _
  %s9 = ssub.s32 1, %s7
  %s10 = scalar_select 0, %s9, %s7
  %v11 = vstv %s5
  %12 = vst [vmem:[#allocation2] sm:$0x1] %v11
  $region1: #{tpu_custom_call.1} parent=0
    #allocation3 [shape = 'u8[4096]{0}', space=vmem, size = 0x1000, scoped, tag = 'input window, operand 0, single buffered']
    #allocation4 [shape = 's32[1]{0}', space=sflag, size = 0x4, scoped, tag = 'scoped memory for tpu_custom_call.1']
    #allocation5 [shape = 'u8[32768]{0}', space=vmem, size = 0x8000, scoped, tag = 'input window, operand 1, single buffered']
    #allocation6 [shape = 's32[1]{0}', space=sflag, size = 0x4, scoped, tag = 'scoped memory for tpu_custom_call.1']
    #allocation7 [shape = 'u8[786432]{0}', space=vmem, size = 0xc0000, scoped, tag = 'input window, operand 3, single buffered']
    %13 = vsyncpa [#allocation4], 0
    %14 = vsyncpa [#allocation6], 0
    // Predicated region
    $region2: #{tpu_custom_call.1} parent=1 // pred_check
      _
    $region3: #{tpu_custom_call.1} parent=1 // pred_check_branch
      %16 = sbr.rel (0) target = $region5
    $region4: #{tpu_custom_call.1} parent=1 // pred_region
      %s18 = ssub.s32 128, 128
      %19 = vsyncadd [#allocation4], %s18
      %s21 = sshll.u32 [#allocation3], 4
      %s22 = int_to_ptr.vmem [resolvable:$true] %s21
      %24 = dma.hbm_to_vmem [thread:$0]  %s0, 128, %s22, [#allocation4]
    $region5: #{tpu_custom_call.1} parent=1 // pred_fallthru
      _
    // Predicated region
    $region6: #{tpu_custom_call.1} parent=1 // pred_check
      _
    $region7: #{tpu_custom_call.1} parent=1 // pred_check_branch
      %26 = sbr.rel (0) target = $region9
    $region8: #{tpu_custom_call.1} parent=1 // pred_region
      %s28 = ssub.s32 1024, 1024
      %29 = vsyncadd [#allocation6], %s28
      %s30 = sshll.u32 [#allocation5], 4
      %s31 = int_to_ptr.vmem [resolvable:$true] %s30
      %36 = dma.hbm_to_vmem [thread:$0]  %s1, 1024, %s31, [#allocation6], 256, 256, 16
    $region9: #{tpu_custom_call.1} parent=1 // pred_fallthru
      _
    // Predicated region
    $region10: #{tpu_custom_call.1} parent=1 // pred_check
      _
    $region11: #{tpu_custom_call.1} parent=1 // pred_check_branch
      %38 = sbr.rel (0) target = $region13
    $region12: #{tpu_custom_call.1} parent=1 // pred_region
      _
    $region13: #{tpu_custom_call.1} parent=1 // pred_fallthru
      _
    // Predicated region
    $region14: #{tpu_custom_call.1} parent=1 // pred_check
      _
    $region15: #{tpu_custom_call.1} parent=1 // pred_check_branch
      %40 = sbr.rel (0) target = $region17
    $region16: #{tpu_custom_call.1} parent=1 // pred_region
      %s42 = ssub.s32 24576, 24576
      %43 = vsyncadd [#allocation6], %s42
      %s44 = sshll.u32 [#allocation7], 4
      %s45 = int_to_ptr.vmem [resolvable:$true] %s44
      %50 = dma.hbm_to_vmem [thread:$0]  %s3, 24576, %s45, [#allocation6], 256, 256, 16
    $region17: #{tpu_custom_call.1} parent=1 // pred_fallthru
      _
    // Predicated region
    $region18: #{tpu_custom_call.1} parent=1 // pred_check
      _
    $region19: #{tpu_custom_call.1} parent=1 // pred_check_branch
      %52 = sbr.rel (0) target = $region21
    $region20: #{tpu_custom_call.1} parent=1 // pred_region
      _
    $region21: #{tpu_custom_call.1} parent=1 // pred_fallthru
      _
    // Predicated region
    $region22: #{tpu_custom_call.1} parent=1 // pred_check
      _
    $region23: #{tpu_custom_call.1} parent=1 // pred_check_branch
      %54 = sbr.rel (0) target = $region25
    $region24: #{tpu_custom_call.1} parent=1 // pred_region
      _
    $region25: #{tpu_custom_call.1} parent=1 // pred_fallthru
      _
    // Predicated region
    $region26: #{tpu_custom_call.1} parent=1 // pred_check
      _
    $region27: #{tpu_custom_call.1} parent=1 // pred_check_branch
      %56 = sbr.rel (0) target = $region29
    $region28: #{tpu_custom_call.1} parent=1 // pred_region
      %57 = dma.done [#allocation4], 128
    $region29: #{tpu_custom_call.1} parent=1 // pred_fallthru
      _
    // Predicated region
    $region30: #{tpu_custom_call.1} parent=1 // pred_check
      _
    $region31: #{tpu_custom_call.1} parent=1 // pred_check_branch
      %59 = sbr.rel (0) target = $region33
    $region32: #{tpu_custom_call.1} parent=1 // pred_region
      %60 = dma.done [#allocation6], 1024
    $region33: #{tpu_custom_call.1} parent=1 // pred_fallthru
      _
    // Predicated region
    $region34: #{tpu_custom_call.1} parent=1 // pred_check
      _
    $region35: #{tpu_custom_call.1} parent=1 // pred_check_branch
      %62 = sbr.rel (0) target = $region37
    $region36: #{tpu_custom_call.1} parent=1 // pred_region
      %63 = dma.done [#allocation6], 24576
    $region37: #{tpu_custom_call.1} parent=1 // pred_fallthru
      _
    %v64 = vld [vmem:[%s2] sm:$0xff]
    %v65 = vld [vmem:[#allocation3] sm:$0xff]
    %v66 = vld [vmem:[#allocation5] sm:$0xff]
    %v67 = vld [vmem:[#allocation5 + $0x8] sm:$0xff]
    %v68 = vld [vmem:[#allocation5 + $0x10] sm:$0xff]
    %v69 = vld [vmem:[#allocation5 + $0x18] sm:$0xff]
    %v70 = vld [vmem:[#allocation5 + $0x20] sm:$0xff]
    %v71 = vld [vmem:[#allocation5 + $0x28] sm:$0xff]
    %v72 = vld [vmem:[#allocation5 + $0x30] sm:$0xff]
    %v73 = vld [vmem:[#allocation5 + $0x38] sm:$0xff]
    %v75 = vlaneseq
    %v76 = vshrl.u32 %v75, 7
    %v77 = vsub.s32 0, %v76
    %v78 = vrot.slane %v64, %v77
    %v79 = vlaneseq
    %v80 = vshrl.u32 %v79, 7
    %v81 = vsub.s32 4, %v80
    %v82 = vrot.slane %v64, %v81
    %v85 = vlaneseq
    %v86 = vshrl.u32 %v85, 7
    %v87 = vsub.s32 0, %v86
    %v88 = vrot.slane %v78, %v87
    %v89 = vlaneseq
    %v90 = vshrl.u32 %v89, 7
    %v91 = vsub.s32 0, %v90
    %v92 = vrot.slane %v82, %v91
    %vm93 = vcmask 261120
    %v95 = vsel %vm93, %v65, 0
    %97 = vmatprep.subr.mxu0 %v67
    %98 = vmatpush1.msra.mxu0 %v66
    %99 = vmatprep.subr.mxu0 %v69
    %100 = vmatpush1.msra.mxu0 %v68
    %101 = vmatprep.subr.mxu0 %v71
    %102 = vmatpush1.msra.mxu0 %v70
    %103 = vmatprep.subr.mxu0 %v73
    %104 = vmatpush1.msra.mxu0 %v72
    %105 = vmatprep.subr.mxu0 0.0
    %106 = vmatpush1.msra.mxu0 0.0
    %107 = vmatprep.subr.mxu0 0.0
    %108 = vmatpush1.msra.mxu0 0.0
    %109 = vmatprep.subr.mxu0 0.0
    %110 = vmatpush1.msra.mxu0 0.0
    %111 = vmatprep.subr.mxu0 0.0
    %112 = vmatpush1.msra.mxu0 0.0
    %113 = vmatprep.subr.mxu0 0.0
    %114 = vmatpush1.msra.mxu0 0.0
    %115 = vmatprep.subr.mxu0 0.0
    %116 = vmatpush1.msra.mxu0 0.0
    %117 = vmatprep.subr.mxu0 0.0
    %118 = vmatpush1.msra.mxu0 0.0
    %119 = vmatprep.subr.mxu0 0.0
    %120 = vmatpush1.msra.mxu0 0.0
    %121 = vmatprep.subr.mxu0 0.0
    %122 = vmatpush1.msra.mxu0 0.0
    %123 = vmatprep.subr.mxu0 0.0
    %124 = vmatpush1.msra.mxu0 0.0
    %125 = vmatprep.subr.mxu0 0.0
    %126 = vmatpush1.msra.mxu0 0.0
    %127 = vmatprep.subr.mxu0 0.0
    %128 = vmatpush1.msra.mxu0 0.0
    %129 = vmatprep.subr.mxu0 0.0
    %130 = vmatpush1.msra.mxu0 0.0
    %131 = vmatprep.subr.mxu0 0.0
    %132 = vmatpush1.msra.mxu0 0.0
    %133 = vmatprep.subr.mxu0 0.0
    %134 = vmatpush1.msra.mxu0 0.0
    %135 = vmatprep.subr.mxu0 0.0
    %136 = vmatpush1.msra.mxu0 0.0
    %137 = vmatprep.subr.mxu0 0.0
    %138 = vmatpush1.msra.mxu0 0.0
    %139 = vmatprep.subr.mxu0 0.0
    %140 = vmatpush1.msra.mxu0 0.0
    %141 = vmatprep.subr.mxu0 0.0
    %142 = vmatpush1.msra.mxu0 0.0
    %143 = vmatprep.subr.mxu0 0.0
    %144 = vmatpush1.msra.mxu0 0.0
    %145 = vmatprep.subr.mxu0 0.0
    %146 = vmatpush1.msra.mxu0 0.0
    %147 = vmatprep.subr.mxu0 0.0
    %148 = vmatpush1.msra.mxu0 0.0
    %149 = vmatprep.subr.mxu0 0.0
    %150 = vmatpush1.msra.mxu0 0.0
    %151 = vmatprep.subr.mxu0 0.0
    %152 = vmatpush1.msra.mxu0 0.0
    %153 = vmatprep.subr.mxu0 0.0
    %154 = vmatpush1.msra.mxu0 0.0
    %155 = vmatprep.subr.mxu0 0.0
    %156 = vmatpush1.msra.mxu0 0.0
    %157 = vmatprep.subr.mxu0 0.0
    %158 = vmatpush1.msra.mxu0 0.0
    %159 = vmatprep.subr.mxu0 0.0
    %160 = vmatpush1.msra.mxu0 0.0
    %161 = vmatprep.mubr.f32.mxu0 0.0
    %162 = vmatmul.mubr.f32.gmra.mrb[0].mxu0 %v95
    %v163 = vpop.f32.mrb[0].mxu0
    %v164 = vadd.f32 %v88, %v163
    %v165 = vpop.f32.mrb[0].mxu0
    %v166 = vadd.f32 %v92, %v165
    %167 = vdwg.mxu0
    %v168 = vmax.f32 %v164, 0.0
    %v169 = vmax.f32 %v166, 0.0
    %v170 = vld [vmem:[#allocation7] sm:$0xff]
    %v171 = vld [vmem:[#allocation7 + $0x8] sm:$0xff]
    %v172 = vld [vmem:[#allocation7 + $0x10] sm:$0xff]
    %v173 = vld [vmem:[#allocation7 + $0x18] sm:$0xff]
    %v174 = vld [vmem:[#allocation7 + $0x20] sm:$0xff]
    %v175 = vld [vmem:[#allocation7 + $0x28] sm:$0xff]
    %v176 = vld [vmem:[#allocation7 + $0x30] sm:$0xff]
    %v177 = vld [vmem:[#allocation7 + $0x38] sm:$0xff]
    %v178 = vld [vmem:[#allocation7 + $0x40] sm:$0xff]
    %v179 = vld [vmem:[#allocation7 + $0x48] sm:$0xff]
    %v180 = vld [vmem:[#allocation7 + $0x50] sm:$0xff]
    %v181 = vld [vmem:[#allocation7 + $0x58] sm:$0xff]
    %v182 = vld [vmem:[#allocation7 + $0x60] sm:$0xff]
    %v183 = vld [vmem:[#allocation7 + $0x68] sm:$0xff]
    %v184 = vld [vmem:[#allocation7 + $0x70] sm:$0xff]
    %v185 = vld [vmem:[#allocation7 + $0x78] sm:$0xff]
    %v186 = vld [vmem:[#allocation7 + $0x80] sm:$0xff]
    %v187 = vld [vmem:[#allocation7 + $0x88] sm:$0xff]
    %v188 = vld [vmem:[#allocation7 + $0x90] sm:$0xff]
    %v189 = vld [vmem:[#allocation7 + $0x98] sm:$0xff]
    %v190 = vld [vmem:[#allocation7 + $0xa0] sm:$0xff]
    %v191 = vld [vmem:[#allocation7 + $0xa8] sm:$0xff]
    %v192 = vld [vmem:[#allocation7 + $0xb0] sm:$0xff]
    %v193 = vld [vmem:[#allocation7 + $0xb8] sm:$0xff]
    %v194 = vld [vmem:[#allocation7 + $0xc0] sm:$0xff]
    %v195 = vld [vmem:[#allocation7 + $0xc8] sm:$0xff]
    %v196 = vld [vmem:[#allocation7 + $0xd0] sm:$0xff]
    %v197 = vld [vmem:[#allocation7 + $0xd8] sm:$0xff]
    %v198 = vld [vmem:[#allocation7 + $0xe0] sm:$0xff]
    %v199 = vld [vmem:[#allocation7 + $0xe8] sm:$0xff]
    %v200 = vld [vmem:[#allocation7 + $0xf0] sm:$0xff]
    %v201 = vld [vmem:[#allocation7 + $0xf8] sm:$0xff]
    %v202 = vld [vmem:[#allocation7 + $0x100] sm:$0xff]
    %v203 = vld [vmem:[#allocation7 + $0x108] sm:$0xff]
    %v204 = vld [vmem:[#allocation7 + $0x110] sm:$0xff]
    %v205 = vld [vmem:[#allocation7 + $0x118] sm:$0xff]
    %v206 = vld [vmem:[#allocation7 + $0x120] sm:$0xff]
    %v207 = vld [vmem:[#allocation7 + $0x128] sm:$0xff]
    %v208 = vld [vmem:[#allocation7 + $0x130] sm:$0xff]
    %v209 = vld [vmem:[#allocation7 + $0x138] sm:$0xff]
    %v210 = vld [vmem:[#allocation7 + $0x140] sm:$0xff]
    %v211 = vld [vmem:[#allocation7 + $0x148] sm:$0xff]
    %v212 = vld [vmem:[#allocation7 + $0x150] sm:$0xff]
    %v213 = vld [vmem:[#allocation7 + $0x158] sm:$0xff]
    %v214 = vld [vmem:[#allocation7 + $0x160] sm:$0xff]
    %v215 = vld [vmem:[#allocation7 + $0x168] sm:$0xff]
    %v216 = vld [vmem:[#allocation7 + $0x170] sm:$0xff]
    %v217 = vld [vmem:[#allocation7 + $0x178] sm:$0xff]
    %v218 = vld [vmem:[#allocation7 + $0x180] sm:$0xff]
    %v219 = vld [vmem:[#allocation7 + $0x188] sm:$0xff]
    %v220 = vld [vmem:[#allocation7 + $0x190] sm:$0xff]
    %v221 = vld [vmem:[#allocation7 + $0x198] sm:$0xff]
    %v222 = vld [vmem:[#allocation7 + $0x1a0] sm:$0xff]
    %v223 = vld [vmem:[#allocation7 + $0x1a8] sm:$0xff]
    %v224 = vld [vmem:[#allocation7 + $0x1b0] sm:$0xff]
    %v225 = vld [vmem:[#allocation7 + $0x1b8] sm:$0xff]
    %v226 = vld [vmem:[#allocation7 + $0x1c0] sm:$0xff]
    %v227 = vld [vmem:[#allocation7 + $0x1c8] sm:$0xff]
    %v228 = vld [vmem:[#allocation7 + $0x1d0] sm:$0xff]
    %v229 = vld [vmem:[#allocation7 + $0x1d8] sm:$0xff]
    %v230 = vld [vmem:[#allocation7 + $0x1e0] sm:$0xff]
    %v231 = vld [vmem:[#allocation7 + $0x1e8] sm:$0xff]
    %v232 = vld [vmem:[#allocation7 + $0x1f0] sm:$0xff]
    %v233 = vld [vmem:[#allocation7 + $0x1f8] sm:$0xff]
    %v234 = vlaneseq
    %v235 = vshrl.u32 %v234, 7
    %v236 = vsub.s32 1, %v235
    %v237 = vrot.slane %v64, %v236
    %v238 = vlaneseq
    %v239 = vshrl.u32 %v238, 7
    %v240 = vsub.s32 5, %v239
    %v241 = vrot.slane %v64, %v240
    %v244 = vlaneseq
    %v245 = vshrl.u32 %v244, 7
    %v246 = vsub.s32 1, %v245
    %v247 = vrot.slane %v237, %v246
    %v248 = vlaneseq
    %v249 = vshrl.u32 %v248, 7
    %v250 = vsub.s32 1, %v249
    %v251 = vrot.slane %v241, %v250
    %252 = vmatprep.subr.mxu0 %v171
    %253 = vmatpush1.msra.mxu0 %v170
    %254 = vmatprep.subr.mxu0 %v173
    %255 = vmatpush1.msra.mxu0 %v172
    %256 = vmatprep.subr.mxu0 %v175
    %257 = vmatpush1.msra.mxu0 %v174
    %258 = vmatprep.subr.mxu0 %v177
    %259 = vmatpush1.msra.mxu0 %v176
    %260 = vmatprep.subr.mxu0 %v179
    %261 = vmatpush1.msra.mxu0 %v178
    %262 = vmatprep.subr.mxu0 %v181
    %263 = vmatpush1.msra.mxu0 %v180
    %264 = vmatprep.subr.mxu0 %v183
    %265 = vmatpush1.msra.mxu0 %v182
    %266 = vmatprep.subr.mxu0 %v185
    %267 = vmatpush1.msra.mxu0 %v184
    %268 = vmatprep.subr.mxu0 %v187
    %269 = vmatpush1.msra.mxu0 %v186
    %270 = vmatprep.subr.mxu0 %v189
    %271 = vmatpush1.msra.mxu0 %v188
    %272 = vmatprep.subr.mxu0 %v191
    %273 = vmatpush1.msra.mxu0 %v190
    %274 = vmatprep.subr.mxu0 %v193
    %275 = vmatpush1.msra.mxu0 %v192
    %276 = vmatprep.subr.mxu0 %v195
    %277 = vmatpush1.msra.mxu0 %v194
    %278 = vmatprep.subr.mxu0 %v197
    %279 = vmatpush1.msra.mxu0 %v196
    %280 = vmatprep.subr.mxu0 %v199
    %281 = vmatpush1.msra.mxu0 %v198
    %282 = vmatprep.subr.mxu0 %v201
    %283 = vmatpush1.msra.mxu0 %v200
    %284 = vmatprep.subr.mxu0 %v203
    %285 = vmatpush1.msra.mxu0 %v202
    %286 = vmatprep.subr.mxu0 %v205
    %287 = vmatpush1.msra.mxu0 %v204
    %288 = vmatprep.subr.mxu0 %v207
    %289 = vmatpush1.msra.mxu0 %v206
    %290 = vmatprep.subr.mxu0 %v209
    %291 = vmatpush1.msra.mxu0 %v208
    %292 = vmatprep.subr.mxu0 %v211
    %293 = vmatpush1.msra.mxu0 %v210
    %294 = vmatprep.subr.mxu0 %v213
    %295 = vmatpush1.msra.mxu0 %v212
    %296 = vmatprep.subr.mxu0 %v215
    %297 = vmatpush1.msra.mxu0 %v214
    %298 = vmatprep.subr.mxu0 %v217
    %299 = vmatpush1.msra.mxu0 %v216
    %300 = vmatprep.subr.mxu0 %v219
    %301 = vmatpush1.msra.mxu0 %v218
    %302 = vmatprep.subr.mxu0 %v221
    %303 = vmatpush1.msra.mxu0 %v220
    %304 = vmatprep.subr.mxu0 %v223
    %305 = vmatpush1.msra.mxu0 %v222
    %306 = vmatprep.subr.mxu0 %v225
    %307 = vmatpush1.msra.mxu0 %v224
    %308 = vmatprep.subr.mxu0 %v227
    %309 = vmatpush1.msra.mxu0 %v226
    %310 = vmatprep.subr.mxu0 %v229
    %311 = vmatpush1.msra.mxu0 %v228
    %312 = vmatprep.subr.mxu0 %v231
    %313 = vmatpush1.msra.mxu0 %v230
    %314 = vmatprep.subr.mxu0 %v233
    %315 = vmatpush1.msra.mxu0 %v232
    %316 = vmatprep.mubr.f32.mxu0 %v169
    %317 = vmatmul.mubr.f32.gmra.mrb[0].mxu0 %v168
    %v318 = vpop.f32.mrb[0].mxu0
    %v319 = vadd.f32 %v247, %v318
    %v320 = vpop.f32.mrb[0].mxu0
    %v321 = vadd.f32 %v251, %v320
    %322 = vdwg.mxu0
    %v323 = vmax.f32 %v319, 0.0
    %v324 = vmax.f32 %v321, 0.0
    %s325 = scalar_lea.vmem [#allocation7], 512
    %v326 = vld [vmem:[%s325] sm:$0xff]
    %v327 = vld [vmem:[%s325 + $0x8] sm:$0xff]
    %v328 = vld [vmem:[%s325 + $0x10] sm:$0xff]
    %v329 = vld [vmem:[%s325 + $0x18] sm:$0xff]
    %v330 = vld [vmem:[%s325 + $0x20] sm:$0xff]
    %v331 = vld [vmem:[%s325 + $0x28] sm:$0xff]
    %v332 = vld [vmem:[%s325 + $0x30] sm:$0xff]
    %v333 = vld [vmem:[%s325 + $0x38] sm:$0xff]
    %v334 = vld [vmem:[%s325 + $0x40] sm:$0xff]
    %v335 = vld [vmem:[%s325 + $0x48] sm:$0xff]
    %v336 = vld [vmem:[%s325 + $0x50] sm:$0xff]
    %v337 = vld [vmem:[%s325 + $0x58] sm:$0xff]
    %v338 = vld [vmem:[%s325 + $0x60] sm:$0xff]
    %v339 = vld [vmem:[%s325 + $0x68] sm:$0xff]
    %v340 = vld [vmem:[%s325 + $0x70] sm:$0xff]
    %v341 = vld [vmem:[%s325 + $0x78] sm:$0xff]
    %v342 = vld [vmem:[%s325 + $0x80] sm:$0xff]
    %v343 = vld [vmem:[%s325 + $0x88] sm:$0xff]
    %v344 = vld [vmem:[%s325 + $0x90] sm:$0xff]
    %v345 = vld [vmem:[%s325 + $0x98] sm:$0xff]
    %v346 = vld [vmem:[%s325 + $0xa0] sm:$0xff]
    %v347 = vld [vmem:[%s325 + $0xa8] sm:$0xff]
    %v348 = vld [vmem:[%s325 + $0xb0] sm:$0xff]
    %v349 = vld [vmem:[%s325 + $0xb8] sm:$0xff]
    %v350 = vld [vmem:[%s325 + $0xc0] sm:$0xff]
    %v351 = vld [vmem:[%s325 + $0xc8] sm:$0xff]
    %v352 = vld [vmem:[%s325 + $0xd0] sm:$0xff]
    %v353 = vld [vmem:[%s325 + $0xd8] sm:$0xff]
    %v354 = vld [vmem:[%s325 + $0xe0] sm:$0xff]
    %v355 = vld [vmem:[%s325 + $0xe8] sm:$0xff]
    %v356 = vld [vmem:[%s325 + $0xf0] sm:$0xff]
    %v357 = vld [vmem:[%s325 + $0xf8] sm:$0xff]
    %v358 = vld [vmem:[%s325 + $0x100] sm:$0xff]
    %v359 = vld [vmem:[%s325 + $0x108] sm:$0xff]
    %v360 = vld [vmem:[%s325 + $0x110] sm:$0xff]
    %v361 = vld [vmem:[%s325 + $0x118] sm:$0xff]
    %v362 = vld [vmem:[%s325 + $0x120] sm:$0xff]
    %v363 = vld [vmem:[%s325 + $0x128] sm:$0xff]
    %v364 = vld [vmem:[%s325 + $0x130] sm:$0xff]
    %v365 = vld [vmem:[%s325 + $0x138] sm:$0xff]
    %v366 = vld [vmem:[%s325 + $0x140] sm:$0xff]
    %v367 = vld [vmem:[%s325 + $0x148] sm:$0xff]
    %v368 = vld [vmem:[%s325 + $0x150] sm:$0xff]
    %v369 = vld [vmem:[%s325 + $0x158] sm:$0xff]
    %v370 = vld [vmem:[%s325 + $0x160] sm:$0xff]
    %v371 = vld [vmem:[%s325 + $0x168] sm:$0xff]
    %v372 = vld [vmem:[%s325 + $0x170] sm:$0xff]
    %v373 = vld [vmem:[%s325 + $0x178] sm:$0xff]
    %v374 = vld [vmem:[%s325 + $0x180] sm:$0xff]
    %v375 = vld [vmem:[%s325 + $0x188] sm:$0xff]
    %v376 = vld [vmem:[%s325 + $0x190] sm:$0xff]
    %v377 = vld [vmem:[%s325 + $0x198] sm:$0xff]
    %v378 = vld [vmem:[%s325 + $0x1a0] sm:$0xff]
    %v379 = vld [vmem:[%s325 + $0x1a8] sm:$0xff]
    %v380 = vld [vmem:[%s325 + $0x1b0] sm:$0xff]
    %v381 = vld [vmem:[%s325 + $0x1b8] sm:$0xff]
    %v382 = vld [vmem:[%s325 + $0x1c0] sm:$0xff]
    %v383 = vld [vmem:[%s325 + $0x1c8] sm:$0xff]
    %v384 = vld [vmem:[%s325 + $0x1d0] sm:$0xff]
    %v385 = vld [vmem:[%s325 + $0x1d8] sm:$0xff]
    %v386 = vld [vmem:[%s325 + $0x1e0] sm:$0xff]
    %v387 = vld [vmem:[%s325 + $0x1e8] sm:$0xff]
    %v388 = vld [vmem:[%s325 + $0x1f0] sm:$0xff]
    %v389 = vld [vmem:[%s325 + $0x1f8] sm:$0xff]
    %v390 = vlaneseq
    %v391 = vshrl.u32 %v390, 7
    %v392 = vsub.s32 2, %v391
    %v393 = vrot.slane %v64, %v392
    %v394 = vlaneseq
    %v395 = vshrl.u32 %v394, 7
    %v396 = vsub.s32 6, %v395
    %v397 = vrot.slane %v64, %v396
    %v400 = vlaneseq
    %v401 = vshrl.u32 %v400, 7
    %v402 = vsub.s32 2, %v401
    %v403 = vrot.slane %v393, %v402
    %v404 = vlaneseq
    %v405 = vshrl.u32 %v404, 7
    %v406 = vsub.s32 2, %v405
    %v407 = vrot.slane %v397, %v406
    %408 = vmatprep.subr.mxu0 %v327
    %409 = vmatpush1.msra.mxu0 %v326
    %410 = vmatprep.subr.mxu0 %v329
    %411 = vmatpush1.msra.mxu0 %v328
    %412 = vmatprep.subr.mxu0 %v331
    %413 = vmatpush1.msra.mxu0 %v330
    %414 = vmatprep.subr.mxu0 %v333
    %415 = vmatpush1.msra.mxu0 %v332
    %416 = vmatprep.subr.mxu0 %v335
    %417 = vmatpush1.msra.mxu0 %v334
    %418 = vmatprep.subr.mxu0 %v337
    %419 = vmatpush1.msra.mxu0 %v336
    %420 = vmatprep.subr.mxu0 %v339
    %421 = vmatpush1.msra.mxu0 %v338
    %422 = vmatprep.subr.mxu0 %v341
    %423 = vmatpush1.msra.mxu0 %v340
    %424 = vmatprep.subr.mxu0 %v343
    %425 = vmatpush1.msra.mxu0 %v342
    %426 = vmatprep.subr.mxu0 %v345
    %427 = vmatpush1.msra.mxu0 %v344
    %428 = vmatprep.subr.mxu0 %v347
    %429 = vmatpush1.msra.mxu0 %v346
    %430 = vmatprep.subr.mxu0 %v349
    %431 = vmatpush1.msra.mxu0 %v348
    %432 = vmatprep.subr.mxu0 %v351
    %433 = vmatpush1.msra.mxu0 %v350
    %434 = vmatprep.subr.mxu0 %v353
    %435 = vmatpush1.msra.mxu0 %v352
    %436 = vmatprep.subr.mxu0 %v355
    %437 = vmatpush1.msra.mxu0 %v354
    %438 = vmatprep.subr.mxu0 %v357
    %439 = vmatpush1.msra.mxu0 %v356
    %440 = vmatprep.subr.mxu0 %v359
    %441 = vmatpush1.msra.mxu0 %v358
    %442 = vmatprep.subr.mxu0 %v361
    %443 = vmatpush1.msra.mxu0 %v360
    %444 = vmatprep.subr.mxu0 %v363
    %445 = vmatpush1.msra.mxu0 %v362
    %446 = vmatprep.subr.mxu0 %v365
    %447 = vmatpush1.msra.mxu0 %v364
    %448 = vmatprep.subr.mxu0 %v367
    %449 = vmatpush1.msra.mxu0 %v366
    %450 = vmatprep.subr.mxu0 %v369
    %451 = vmatpush1.msra.mxu0 %v368
    %452 = vmatprep.subr.mxu0 %v371
    %453 = vmatpush1.msra.mxu0 %v370
    %454 = vmatprep.subr.mxu0 %v373
    %455 = vmatpush1.msra.mxu0 %v372
    %456 = vmatprep.subr.mxu0 %v375
    %457 = vmatpush1.msra.mxu0 %v374
    %458 = vmatprep.subr.mxu0 %v377
    %459 = vmatpush1.msra.mxu0 %v376
    %460 = vmatprep.subr.mxu0 %v379
    %461 = vmatpush1.msra.mxu0 %v378
    %462 = vmatprep.subr.mxu0 %v381
    %463 = vmatpush1.msra.mxu0 %v380
    %464 = vmatprep.subr.mxu0 %v383
    %465 = vmatpush1.msra.mxu0 %v382
    %466 = vmatprep.subr.mxu0 %v385
    %467 = vmatpush1.msra.mxu0 %v384
    %468 = vmatprep.subr.mxu0 %v387
    %469 = vmatpush1.msra.mxu0 %v386
    %470 = vmatprep.subr.mxu0 %v389
    %471 = vmatpush1.msra.mxu0 %v388
    %472 = vmatprep.mubr.f32.mxu0 %v324
    %473 = vmatmul.mubr.f32.gmra.mrb[0].mxu0 %v323
    %v474 = vpop.f32.mrb[0].mxu0
    %v475 = vadd.f32 %v403, %v474
    %v476 = vpop.f32.mrb[0].mxu0
    %v477 = vadd.f32 %v407, %v476
    %478 = vdwg.mxu0
    %v479 = vmax.f32 %v475, 0.0
    %v480 = vmax.f32 %v477, 0.0
    %s481 = scalar_lea.vmem [#allocation7], 1024
    %v482 = vld [vmem:[%s481] sm:$0xff]
    %v483 = vld [vmem:[%s481 + $0x8] sm:$0xff]
    %v484 = vld [vmem:[%s481 + $0x10] sm:$0xff]
    %v485 = vld [vmem:[%s481 + $0x18] sm:$0xff]
    %v486 = vld [vmem:[%s481 + $0x20] sm:$0xff]
    %v487 = vld [vmem:[%s481 + $0x28] sm:$0xff]
    %v488 = vld [vmem:[%s481 + $0x30] sm:$0xff]
    %v489 = vld [vmem:[%s481 + $0x38] sm:$0xff]
    %v490 = vld [vmem:[%s481 + $0x40] sm:$0xff]
    %v491 = vld [vmem:[%s481 + $0x48] sm:$0xff]
    %v492 = vld [vmem:[%s481 + $0x50] sm:$0xff]
    %v493 = vld [vmem:[%s481 + $0x58] sm:$0xff]
    %v494 = vld [vmem:[%s481 + $0x60] sm:$0xff]
    %v495 = vld [vmem:[%s481 + $0x68] sm:$0xff]
    %v496 = vld [vmem:[%s481 + $0x70] sm:$0xff]
    %v497 = vld [vmem:[%s481 + $0x78] sm:$0xff]
    %v498 = vld [vmem:[%s481 + $0x80] sm:$0xff]
    %v499 = vld [vmem:[%s481 + $0x88] sm:$0xff]
    %v500 = vld [vmem:[%s481 + $0x90] sm:$0xff]
    %v501 = vld [vmem:[%s481 + $0x98] sm:$0xff]
    %v502 = vld [vmem:[%s481 + $0xa0] sm:$0xff]
    %v503 = vld [vmem:[%s481 + $0xa8] sm:$0xff]
    %v504 = vld [vmem:[%s481 + $0xb0] sm:$0xff]
    %v505 = vld [vmem:[%s481 + $0xb8] sm:$0xff]
    %v506 = vld [vmem:[%s481 + $0xc0] sm:$0xff]
    %v507 = vld [vmem:[%s481 + $0xc8] sm:$0xff]
    %v508 = vld [vmem:[%s481 + $0xd0] sm:$0xff]
    %v509 = vld [vmem:[%s481 + $0xd8] sm:$0xff]
    %v510 = vld [vmem:[%s481 + $0xe0] sm:$0xff]
    %v511 = vld [vmem:[%s481 + $0xe8] sm:$0xff]
    %v512 = vld [vmem:[%s481 + $0xf0] sm:$0xff]
    %v513 = vld [vmem:[%s481 + $0xf8] sm:$0xff]
    %v514 = vld [vmem:[%s481 + $0x100] sm:$0xff]
    %v515 = vld [vmem:[%s481 + $0x108] sm:$0xff]
    %v516 = vld [vmem:[%s481 + $0x110] sm:$0xff]
    %v517 = vld [vmem:[%s481 + $0x118] sm:$0xff]
    %v518 = vld [vmem:[%s481 + $0x120] sm:$0xff]
    %v519 = vld [vmem:[%s481 + $0x128] sm:$0xff]
    %v520 = vld [vmem:[%s481 + $0x130] sm:$0xff]
    %v521 = vld [vmem:[%s481 + $0x138] sm:$0xff]
    %v522 = vld [vmem:[%s481 + $0x140] sm:$0xff]
    %v523 = vld [vmem:[%s481 + $0x148] sm:$0xff]
    %v524 = vld [vmem:[%s481 + $0x150] sm:$0xff]
    %v525 = vld [vmem:[%s481 + $0x158] sm:$0xff]
    %v526 = vld [vmem:[%s481 + $0x160] sm:$0xff]
    %v527 = vld [vmem:[%s481 + $0x168] sm:$0xff]
    %v528 = vld [vmem:[%s481 + $0x170] sm:$0xff]
    %v529 = vld [vmem:[%s481 + $0x178] sm:$0xff]
    %v530 = vld [vmem:[%s481 + $0x180] sm:$0xff]
    %v531 = vld [vmem:[%s481 + $0x188] sm:$0xff]
    %v532 = vld [vmem:[%s481 + $0x190] sm:$0xff]
    %v533 = vld [vmem:[%s481 + $0x198] sm:$0xff]
    %v534 = vld [vmem:[%s481 + $0x1a0] sm:$0xff]
    %v535 = vld [vmem:[%s481 + $0x1a8] sm:$0xff]
    %v536 = vld [vmem:[%s481 + $0x1b0] sm:$0xff]
    %v537 = vld [vmem:[%s481 + $0x1b8] sm:$0xff]
    %v538 = vld [vmem:[%s481 + $0x1c0] sm:$0xff]
    %v539 = vld [vmem:[%s481 + $0x1c8] sm:$0xff]
    %v540 = vld [vmem:[%s481 + $0x1d0] sm:$0xff]
    %v541 = vld [vmem:[%s481 + $0x1d8] sm:$0xff]
    %v542 = vld [vmem:[%s481 + $0x1e0] sm:$0xff]
    %v543 = vld [vmem:[%s481 + $0x1e8] sm:$0xff]
    %v544 = vld [vmem:[%s481 + $0x1f0] sm:$0xff]
    %v545 = vld [vmem:[%s481 + $0x1f8] sm:$0xff]
    %v546 = vlaneseq
    %v547 = vshrl.u32 %v546, 7
    %v548 = vsub.s32 3, %v547
    %v549 = vrot.slane %v64, %v548
    %v550 = vlaneseq
    %v551 = vshrl.u32 %v550, 7
    %v552 = vsub.s32 7, %v551
    %v553 = vrot.slane %v64, %v552
    %v556 = vlaneseq
    %v557 = vshrl.u32 %v556, 7
    %v558 = vsub.s32 3, %v557
    %v559 = vrot.slane %v549, %v558
    %v560 = vlaneseq
    %v561 = vshrl.u32 %v560, 7
    %v562 = vsub.s32 3, %v561
    %v563 = vrot.slane %v553, %v562
    %564 = vmatprep.subr.mxu0 %v483
    %565 = vmatpush1.msra.mxu0 %v482
    %566 = vmatprep.subr.mxu0 %v485
    %567 = vmatpush1.msra.mxu0 %v484
    %568 = vmatprep.subr.mxu0 %v487
    %569 = vmatpush1.msra.mxu0 %v486
    %570 = vmatprep.subr.mxu0 %v489
    %571 = vmatpush1.msra.mxu0 %v488
    %572 = vmatprep.subr.mxu0 %v491
    %573 = vmatpush1.msra.mxu0 %v490
    %574 = vmatprep.subr.mxu0 %v493
    %575 = vmatpush1.msra.mxu0 %v492
    %576 = vmatprep.subr.mxu0 %v495
    %577 = vmatpush1.msra.mxu0 %v494
    %578 = vmatprep.subr.mxu0 %v497
    %579 = vmatpush1.msra.mxu0 %v496
    %580 = vmatprep.subr.mxu0 %v499
    %581 = vmatpush1.msra.mxu0 %v498
    %582 = vmatprep.subr.mxu0 %v501
    %583 = vmatpush1.msra.mxu0 %v500
    %584 = vmatprep.subr.mxu0 %v503
    %585 = vmatpush1.msra.mxu0 %v502
    %586 = vmatprep.subr.mxu0 %v505
    %587 = vmatpush1.msra.mxu0 %v504
    %588 = vmatprep.subr.mxu0 %v507
    %589 = vmatpush1.msra.mxu0 %v506
    %590 = vmatprep.subr.mxu0 %v509
    %591 = vmatpush1.msra.mxu0 %v508
    %592 = vmatprep.subr.mxu0 %v511
    %593 = vmatpush1.msra.mxu0 %v510
    %594 = vmatprep.subr.mxu0 %v513
    %595 = vmatpush1.msra.mxu0 %v512
    %596 = vmatprep.subr.mxu0 %v515
    %597 = vmatpush1.msra.mxu0 %v514
    %598 = vmatprep.subr.mxu0 %v517
    %599 = vmatpush1.msra.mxu0 %v516
    %600 = vmatprep.subr.mxu0 %v519
    %601 = vmatpush1.msra.mxu0 %v518
    %602 = vmatprep.subr.mxu0 %v521
    %603 = vmatpush1.msra.mxu0 %v520
    %604 = vmatprep.subr.mxu0 %v523
    %605 = vmatpush1.msra.mxu0 %v522
    %606 = vmatprep.subr.mxu0 %v525
    %607 = vmatpush1.msra.mxu0 %v524
    %608 = vmatprep.subr.mxu0 %v527
    %609 = vmatpush1.msra.mxu0 %v526
    %610 = vmatprep.subr.mxu0 %v529
    %611 = vmatpush1.msra.mxu0 %v528
    %612 = vmatprep.subr.mxu0 %v531
    %613 = vmatpush1.msra.mxu0 %v530
    %614 = vmatprep.subr.mxu0 %v533
    %615 = vmatpush1.msra.mxu0 %v532
    %616 = vmatprep.subr.mxu0 %v535
    %617 = vmatpush1.msra.mxu0 %v534
    %618 = vmatprep.subr.mxu0 %v537
    %619 = vmatpush1.msra.mxu0 %v536
    %620 = vmatprep.subr.mxu0 %v539
    %621 = vmatpush1.msra.mxu0 %v538
    %622 = vmatprep.subr.mxu0 %v541
    %623 = vmatpush1.msra.mxu0 %v540
    %624 = vmatprep.subr.mxu0 %v543
    %625 = vmatpush1.msra.mxu0 %v542
    %626 = vmatprep.subr.mxu0 %v545
    %627 = vmatpush1.msra.mxu0 %v544
    %628 = vmatprep.mubr.f32.mxu0 %v480
    %629 = vmatmul.mubr.f32.gmra.mrb[0].mxu0 %v479
    %v630 = vpop.f32.mrb[0].mxu0
    %v631 = vadd.f32 %v559, %v630
    %v632 = vpop.f32.mrb[0].mxu0
    %v633 = vadd.f32 %v563, %v632
    %634 = vdwg.mxu0
    %v635 = vmax.f32 %v631, 0.0
    %v636 = vmax.f32 %v633, 0.0
    %v637 = vld [vmem:[%s4] sm:$0x3]
    %v639 = vlaneseq
    %v640 = vshrl.u32 %v639, 7
    %v641 = vsub.s32 0, %v640
    %v642 = vrot.slane %v637, %v641
    %v643 = vlaneseq
    %v644 = vshrl.u32 %v643, 7
    %v645 = vsub.s32 1, %v644
    %v646 = vrot.slane %v637, %v645
    %v649 = vmul.f32 %v635, %v642
    %v650 = vmul.f32 %v636, %v646
    %v651 = vadd.f32 %v649, %v650
    %652 = vadd.xlane.f32.xlu0 %v651
    %v653 = vpop.xlane.xlu0 %652
    %v654 = vld [vmem:[#allocation2] sm:$0x1]
    %v656 = vlaneseq
    %v657 = vshrl.u32 %v656, 7
    %v658 = vsub.s32 0, %v657
    %v659 = vrot.slane %v654, %v658
    %v661 = vadd.f32 %v653, %v659
    %vm662 = vcmask 7168
    %663 = vst.msk [vmem:[%s6] sm:$0xff] %vm662, %v661
    // Predicated region
    $region38: #{tpu_custom_call.1} parent=1 // pred_check
      _
    $region39: #{tpu_custom_call.1} parent=1 // pred_check_branch
      %665 = sbr.rel (0) target = $region41
    $region40: #{tpu_custom_call.1} parent=1 // pred_region
      _
    $region41: #{tpu_custom_call.1} parent=1 // pred_fallthru
      _
    // Predicated region
    $region42: #{tpu_custom_call.1} parent=1 // pred_check
      _
    $region43: #{tpu_custom_call.1} parent=1 // pred_check_branch
      %667 = sbr.rel (0) target = $region45
    $region44: #{tpu_custom_call.1} parent=1 // pred_region
      _
    $region45: #{tpu_custom_call.1} parent=1 // pred_fallthru
      _
    %668 = vsyncpa [#allocation4], 1
    %669 = vsyncpa [#allocation6], 1

</llo_original>
